<compile_context>
chip_gen: v5e
topology: v5e:2x2
jax: 0.10.0
libtpu: 0.0.40
codegen_flags: <defaults>
</compile_context>

<pallas_src>
import functools

import jax
import jax.numpy as jnp
from jax.experimental import pallas as pl
from jax.experimental.pallas import tpu as pltpu


# ------------------------------ Pallas kernel -------------------------------


def _mm_kernel(*refs, apply_relu, has_bias, fuse_w2):
    """o = epilogue(x @ w), accumulated over the k grid axis.

    epilogue: (+bias) -> (relu) -> (@ w2) applied on the f32 accumulator at the
    last k step.  Ref order: x, w, [bias], [w2], o, acc_scratch.
    """
    it = iter(refs)
    x_ref = next(it)
    w_ref = next(it)
    b_ref = next(it) if has_bias else None
    w2_ref = next(it) if fuse_w2 else None
    o_ref = next(it)
    acc_ref = next(it)

    @pl.when(pl.program_id(1) == 0)
    def _():
        acc_ref[...] = jnp.zeros_like(acc_ref)

    acc_ref[...] += jnp.dot(x_ref[...], w_ref[...],
                            preferred_element_type=jnp.float32)

    @pl.when(pl.program_id(1) == pl.num_programs(1) - 1)
    def _():
        r = acc_ref[...]
        if has_bias:
            r = r + b_ref[...]                 # bias add in f32
        if apply_relu:
            r = jnp.maximum(r, 0.0)            # relu in f32 (v5e has no bf16 VPU)
        if fuse_w2:
            # Fused second GEMM: W2 is VMEM-resident; rides the otherwise-idle
            # MXU slot of a memory-bound aggregation kernel.
            r = jnp.dot(r.astype(w2_ref.dtype), w2_ref[...],
                        preferred_element_type=jnp.float32)
        o_ref[...] = r.astype(o_ref.dtype)


# ------------------------------ host helpers ---------------------------------


def _round_up(x, m):
    return ((x + m - 1) // m) * m


def _feat_pad(c):
    # Feature dims: lane-dense 128 multiples; >512 -> 256 multiples so the
    # contraction tile never has to fall back below 256 on v6e/v7x.
    return _round_up(c, 128) if c <= 512 else _round_up(c, 256)


def _node_pad(n):
    # Node dim (contraction axis of the aggregation GEMMs): pad with zeros so
    # tk=512 always divides it exactly for large graphs (never tk=K).
    return _round_up(n, 128) if n <= 512 else _round_up(n, 512)


def _k_tile(k):
    # K is always host-padded, so an exact divisor exists; no partial K blocks
    # may ever pollute the f32 accumulator.
    if k <= 512:
        return k
    tk = 512 if k % 512 == 0 else 256
    assert k % tk == 0, f"contraction dim {k} must be host-padded"
    return tk


def _row_tile(m, widest_out, dtype):
    # Sublane pack of the compute dtype (16 rows/vreg for bf16, 8 for f32).
    pack = {4: 8, 2: 16, 1: 32}[jnp.dtype(dtype).itemsize]
    cap = 1024 if widest_out <= 256 else 512
    # Keep >=2 row blocks so the "parallel" axis shards across v7x's 2 TCs.
    cap = min(cap, max(pack, _round_up(pl.cdiv(m, 2), pack)))
    return max(pack, min(cap, _round_up(m, pack)))


def _pad2d(a, rows, cols):
    pr, pc = rows - a.shape[0], cols - a.shape[1]
    if pr == 0 and pc == 0:
        return a
    return jnp.pad(a, ((0, pr), (0, pc)))


def _vmem_limit(tm, tk, n_w, nout, itemsize, resident_bytes):
    dbuf = 2 * ((tm * tk + tk * n_w) * itemsize + tm * nout * itemsize)
    acc = tm * n_w * 4
    total = int((dbuf + acc + 2 * resident_bytes) * 1.3) + (4 << 20)
    return max(8 << 20, min(total, 48 << 20))   # stay well inside v7x's 64 MiB


# ------------------------------ GEMM wrapper ---------------------------------


def matmul_fused(x, w, b=None, *, apply_relu=False, w2=None):
    """out = epilogue(x @ w) with epilogue = (+b) -> (relu) -> (@ w2).

    x: [M, K]; w: [K, Nw]; b: [1, Nw] f32 or None; w2: [Nw, Nout] or None.
    K must be an exact multiple of the chosen k tile (host-padded with zeros).
    """
    m, k = x.shape
    k2, n_w = w.shape
    assert k == k2
    nout = w2.shape[1] if w2 is not None else n_w
    if b is not None:
        assert b.shape == (1, n_w)

    tm = _row_tile(m, max(n_w, nout), x.dtype)
    tk = _k_tile(k)
    grid = (pl.cdiv(m, tm), k // tk)

    in_specs = [pl.BlockSpec((tm, tk), lambda i, kk: (i, kk)),
                pl.BlockSpec((tk, n_w), lambda i, kk: (kk, 0))]
    args = [x, w]
    resident = 0
    if b is not None:
        in_specs.append(pl.BlockSpec((1, n_w), lambda i, kk: (0, 0)))
        args.append(b)
        resident += b.size * 4
    if w2 is not None:
        in_specs.append(pl.BlockSpec(w2.shape, lambda i, kk: (0, 0)))
        args.append(w2)
        resident += w2.size * jnp.dtype(w2.dtype).itemsize

    kern = functools.partial(_mm_kernel,
                             apply_relu=apply_relu,
                             has_bias=b is not None,
                             fuse_w2=w2 is not None)

    itemsize = jnp.dtype(x.dtype).itemsize
    flops = 2 * m * k * n_w + (2 * m * n_w * nout if w2 is not None else 0)
    cost = pl.CostEstimate(
        flops=flops,
        transcendentals=0,
        bytes_accessed=(m * k + k * n_w + m * nout) * itemsize + resident,
    )

    # TODO(synk): if profiles show exposed DMA on the A_hat stream, add
    # pipeline_mode=pl.Buffered(3) on in_specs[0].
    return pl.pallas_call(
        kern,
        out_shape=jax.ShapeDtypeStruct((m, nout), x.dtype),
        grid_spec=pltpu.PrefetchScalarGridSpec(
            num_scalar_prefetch=0,
            grid=grid,
            in_specs=in_specs,
            out_specs=pl.BlockSpec((tm, nout), lambda i, kk: (i, 0)),
            scratch_shapes=[pltpu.VMEM((tm, n_w), jnp.float32)],
        ),
        compiler_params=pltpu.CompilerParams(
            dimension_semantics=("parallel", "arbitrary"),
            vmem_limit_bytes=_vmem_limit(tm, tk, n_w, nout, itemsize, resident),
        ),
        cost_estimate=cost,
    )(*args)


# ------------------------- GCN graph preprocessing ---------------------------


def build_norm_adj(edge_index, edge_weight, num_nodes):
    """Dense A_hat = D^-1/2 (A + I) D^-1/2, matching torch_geometric gcn_norm
    (add_self_loops=True, fill_value=1, flow='source_to_target')."""
    row, col = edge_index[0], edge_index[1]
    if edge_weight is None:
        edge_weight = jnp.ones(row.shape[0], jnp.float32)
    loop = jnp.arange(num_nodes, dtype=row.dtype)
    row = jnp.concatenate([row, loop])
    col = jnp.concatenate([col, loop])
    ew = jnp.concatenate([edge_weight.astype(jnp.float32),
                          jnp.ones(num_nodes, jnp.float32)])
    deg = jnp.zeros((num_nodes,), jnp.float32).at[col].add(ew)
    deg_inv_sqrt = jnp.where(deg > 0, jax.lax.rsqrt(deg), 0.0)
    norm = deg_inv_sqrt[row] * ew * deg_inv_sqrt[col]
    return jnp.zeros((num_nodes, num_nodes), jnp.float32).at[col, row].add(norm)


# ----------------------------- GCN module (JAX) ------------------------------


class GCNPallas:
    """JAX/Pallas port of GCN(in, hidden, out) — inference (eval) forward."""

    def __init__(self, in_channels, hidden_channels, out_channels, key,
                 compute_dtype=jnp.bfloat16):
        self.in_channels = in_channels
        self.hidden_channels = hidden_channels
        self.out_channels = out_channels
        self.compute_dtype = compute_dtype

        k1, k2, k3, k4 = jax.random.split(key, 4)

        def glorot(k, fan_out, fan_in):
            bound = (6.0 / (fan_in + fan_out)) ** 0.5
            return jax.random.uniform(k, (fan_out, fan_in), jnp.float32,
                                      -bound, bound)

        # torch / PyG layout: weight is (out, in); forward uses x @ W.T
        self.w1 = glorot(k1, hidden_channels, in_channels)
        self.b1 = jax.random.uniform(k2, (hidden_channels,), jnp.float32, -0.1, 0.1)
        self.w2 = glorot(k3, out_channels, hidden_channels)
        self.b2 = jax.random.uniform(k4, (out_channels,), jnp.float32, -0.1, 0.1)

        # Hoisted out of forward(): pad feature dims, pre-transpose weights.
        self._cin_p = _feat_pad(in_channels)
        self._hid_p = _feat_pad(hidden_channels)
        self._out_p = _feat_pad(out_channels)

        self._w1t = _pad2d(self.w1.T, self._cin_p, self._hid_p).astype(compute_dtype)
        self._w2t = _pad2d(self.w2.T, self._hid_p, self._out_p).astype(compute_dtype)
        # Biases stay f32: added to the f32 accumulator inside the kernel.
        self._b1 = _pad2d(self.b1[None, :], 1, self._hid_p)
        self._b2 = _pad2d(self.b2[None, :], 1, self._out_p)

        self._a_hat = None
        self._n = None
        self._n_pad = None

    def set_graph(self, edge_index, edge_weight, num_nodes):
        """Build + cache the padded, compute-dtype A_hat (hoisted XLA scatter)."""
        # TODO(synk): replace dense A_hat with a sparse/padded-neighbor
        # aggregation kernel (scalar-prefetched row offsets) for large graphs;
        # dense aggregation moves O(N^2) bytes regardless of sparsity.
        self._n = int(num_nodes)
        self._n_pad = _node_pad(self._n)
        a = build_norm_adj(edge_index, edge_weight, self._n)
        self._a_hat = _pad2d(a, self._n_pad, self._n_pad).astype(self.compute_dtype)

    def forward(self, x, edge_index=None, edge_weight=None):
        # TODO(synk): training-mode dropout (p=0.5) omitted — inference path only
        # (would use pltpu.prng_seed / pltpu.prng_random_bits inside the kernel).
        if edge_index is not None or self._a_hat is None:
            self.set_graph(edge_index, edge_weight, x.shape[0])
        a_hat = self._a_hat                                   # (n_pad, n_pad)
        x_p = _pad2d(x, self._n_pad, self._cin_p).astype(self.compute_dtype)

        # 1) feature transform: XW1 = X @ W1^T                       (no bias)
        xw1 = matmul_fused(x_p, self._w1t)
        # 2) layer-1 aggregation fused with layer-2 feature transform:
        #    HW2 = relu(A_hat @ XW1 + b1) @ W2^T       (h never touches HBM)
        hw2 = matmul_fused(a_hat, xw1, self._b1, apply_relu=True, w2=self._w2t)
        # 3) layer-2 aggregation: out = A_hat @ HW2 + b2
        out = matmul_fused(a_hat, hw2, self._b2)
        return out[:self._n, :self.out_channels]


def gcn_reference(x, a_hat, w1, b1, w2, b2):
    """Pure-JAX dense reference (same math as GCNConv in eval mode)."""
    h = jnp.maximum(a_hat @ (x @ w1.T) + b1, 0.0)
    return a_hat @ (h @ w2.T) + b2


# ---------------------------------- demo -------------------------------------


if __name__ == "__main__":
    key = jax.random.PRNGKey(0)
    kx, kw = jax.random.split(key, 2)

    N, C_IN, C_HID, C_OUT = 12, 16, 32, 8

    x = jax.random.normal(kx, (N, C_IN), dtype=jnp.float32)

    # Small deterministic graph: bidirectional ring + a few chords.
    src = jnp.arange(N, dtype=jnp.int32)
    dst = (src + 1) % N
    chord_s = jnp.array([0, 2, 4, 6], dtype=jnp.int32)
    chord_d = jnp.array([5, 7, 9, 11], dtype=jnp.int32)
    row = jnp.concatenate([src, dst, chord_s, chord_d])
    col = jnp.concatenate([dst, src, chord_d, chord_s])
    edge_index = jnp.stack([row, col])      # shape (2, 32)
    edge_weight = None                      # defaults to ones, as in GCNConv

    a_hat_ref = build_norm_adj(edge_index, edge_weight, N)

    # ---- default path: bf16 operands / f32 accumulation ----
    model = GCNPallas(C_IN, C_HID, C_OUT, kw)            # compute_dtype=bf16
    out = model.forward(x, edge_index, edge_weight)
    jax.block_until_ready(out)
    assert out.shape == (N, C_OUT)

    ref = gcn_reference(x, a_hat_ref, model.w1, model.b1, model.w2, model.b2)
    assert jnp.allclose(out.astype(jnp.float32), ref, atol=1.5e-1, rtol=1.5e-1)

    # ---- f32 path (tight tolerance) ----
    model_f32 = GCNPallas(C_IN, C_HID, C_OUT, kw, compute_dtype=jnp.float32)
    out_f32 = model_f32.forward(x, edge_index, edge_weight)
    jax.block_until_ready(out_f32)
    assert out_f32.shape == (N, C_OUT)
    assert jnp.allclose(out_f32, ref, atol=2e-4, rtol=2e-4)

    # cached-graph re-run (A_hat not rebuilt)
    out2 = model.forward(x)
    jax.block_until_ready(out2)
    assert jnp.allclose(out2, out)

    print("KERNEL_OK")
</pallas_src>

<mosaic_0001>
module attributes {stable_mosaic.version = 11 : i64} {
  func.func @_mm_kernel(%arg0: i32, %arg1: i32, %arg2: memref<64x128xbf16, #tpu.memory_space<vmem>>, %arg3: memref<128x128xbf16, #tpu.memory_space<vmem>>, %arg4: memref<64x128xbf16, #tpu.memory_space<vmem>>, %arg5: memref<64x128xf32, #tpu.memory_space<vmem>>) attributes {dimension_semantics = [#tpu.dimension_semantics<parallel>, #tpu.dimension_semantics<arbitrary>], iteration_bounds = array<i64: 2, 1>, scalar_prefetch = 0 : i64, scratch_operands = 1 : i64, tpu.core_type = #tpu.core_type<tc>, window_params = [{transform_indices = @transform_0, window_bounds = array<i64: 64, 128>}, {transform_indices = @transform_1, window_bounds = array<i64: 128, 128>}, {transform_indices = @transform_2, window_bounds = array<i64: 64, 128>}]} {
    %c0_i32 = arith.constant 0 : i32
    %0 = arith.cmpi eq, %arg1, %c0_i32 : i32
    %1 = arith.extui %0 : i1 to i32
    %c0_i32_0 = arith.constant 0 : i32
    %2 = arith.cmpi ne, %1, %c0_i32_0 : i32
    scf.if %2 {
      %cst_10 = arith.constant 0.000000e+00 : f32
      %12 = vector.broadcast %cst_10 : f32 to vector<64x128xf32>
      %c0_11 = arith.constant 0 : index
      %c0_12 = arith.constant 0 : index
      %13 = vector.load %arg5[%c0_11, %c0_12] : memref<64x128xf32, #tpu.memory_space<vmem>>, vector<64x128xf32>
      tpu.vector_store %arg5[%c0_11, %c0_12], %12 {strides = array<i32>} : memref<64x128xf32, #tpu.memory_space<vmem>>, vector<64x128xf32>,
    } else {
    }
    %c0 = arith.constant 0 : index
    %c0_1 = arith.constant 0 : index
    %3 = vector.load %arg5[%c0, %c0_1] : memref<64x128xf32, #tpu.memory_space<vmem>>, vector<64x128xf32>
    %c0_2 = arith.constant 0 : index
    %c0_3 = arith.constant 0 : index
    %4 = vector.load %arg2[%c0_2, %c0_3] : memref<64x128xbf16, #tpu.memory_space<vmem>>, vector<64x128xbf16>
    %c0_4 = arith.constant 0 : index
    %c0_5 = arith.constant 0 : index
    %5 = vector.load %arg3[%c0_4, %c0_5] : memref<128x128xbf16, #tpu.memory_space<vmem>>, vector<128x128xbf16>
    %cst = arith.constant dense<0.000000e+00> : vector<64x128xf32>
    %6 = tpu.matmul %4, %5, %cst {dimension_numbers = #tpu.dot_dimension_numbers<[1], [0], [0], [1], [0, 0, 1, 1], [], []>} : vector<64x128xbf16>, vector<128x128xbf16>, vector<64x128xf32> -> vector<64x128xf32>
    %7 = arith.addf %3, %6 : vector<64x128xf32>
    %c0_6 = arith.constant 0 : index
    %c0_7 = arith.constant 0 : index
    %8 = vector.load %arg5[%c0_6, %c0_7] : memref<64x128xf32, #tpu.memory_space<vmem>>, vector<64x128xf32>
    tpu.vector_store %arg5[%c0_6, %c0_7], %7 {strides = array<i32>} : memref<64x128xf32, #tpu.memory_space<vmem>>, vector<64x128xf32>,
    %c0_i32_8 = arith.constant 0 : i32
    %9 = arith.cmpi eq, %arg1, %c0_i32_8 : i32
    %10 = arith.extui %9 : i1 to i32
    %c0_i32_9 = arith.constant 0 : i32
    %11 = arith.cmpi ne, %10, %c0_i32_9 : i32
    scf.if %11 {
      %c0_10 = arith.constant 0 : index
      %c0_11 = arith.constant 0 : index
      %12 = vector.load %arg5[%c0_10, %c0_11] : memref<64x128xf32, #tpu.memory_space<vmem>>, vector<64x128xf32>
      %13 = arith.truncf %12 : vector<64x128xf32> to vector<64x128xbf16>
      %c0_12 = arith.constant 0 : index
      %c0_13 = arith.constant 0 : index
      %14 = vector.load %arg4[%c0_12, %c0_13] : memref<64x128xbf16, #tpu.memory_space<vmem>>, vector<64x128xbf16>
      tpu.vector_store %arg4[%c0_12, %c0_13], %13 {strides = array<i32>} : memref<64x128xbf16, #tpu.memory_space<vmem>>, vector<64x128xbf16>,
    } else {
    }
    return
  }
  func.func @transform_0(%arg0: i32, %arg1: i32) -> (i32, i32) {
    %c0_i32 = arith.constant 0 : i32
    return %arg0, %arg1 : i32, i32
  }
  func.func @transform_1(%arg0: i32, %arg1: i32) -> (i32, i32) {
    %c0_i32 = arith.constant 0 : i32
    %c0_i32_0 = arith.constant 0 : i32
    return %arg1, %c0_i32 : i32, i32
  }
  func.func @transform_2(%arg0: i32, %arg1: i32) -> (i32, i32) {
    %c0_i32 = arith.constant 0 : i32
    %c0_i32_0 = arith.constant 0 : i32
    return %arg0, %c0_i32 : i32, i32
  }
}

</mosaic_0001>

<llo_original>
// kernel: tpu_custom_call.1
$region0: #{tpu_custom_call.1}
  #allocation0 [shape = 'u32[]', space=smem, size = 0x4, offset = 0x4, fixed_abs, tag = 'smem constant byte address 0x4 - core index']
  #allocation1 [shape = 'u32[72,128]{1,0:T(1,128)}', space=vmem, size = 0x9000, scoped, tag = 'internal scratch']
  #allocation2 [shape = 'f32[64,128]{1,0:T(8,128)}', space=vmem, size = 0x8000, scoped, tag = 'scratch operand']
  %s0 = inlined_call_operand.hbm [shape: bf16[128,128], index: 0, kind: input, shape index: {}]
  %s1 = inlined_call_operand.hbm [shape: bf16[128,128], index: 1, kind: input, shape index: {}]
  %s2 = inlined_call_operand.hbm [shape: bf16[128,128], index: 2, kind: output, shape index: {}]
  %s3 = sld [smem:[#allocation0]]
  $region57: #{tpu_custom_call.1} parent=0
    _
  %s5 = ssub.s32 1, %s3
  %s6 = scalar_select 0, %s5, %s3
  $region1: #{tpu_custom_call.1} parent=0
    #allocation3 [shape = 'u8[32768]{0}', space=vmem, size = 0x8000, scoped, tag = 'input window, operand 0']
    #allocation4 [shape = 's32[2]{0}', space=sflag, size = 0x8, scoped, tag = 'scoped memory for tpu_custom_call.1']
    #allocation5 [shape = 's32[2]{0}', space=sflag, size = 0x8, scoped, tag = 'scoped memory for tpu_custom_call.1']
    #allocation6 [shape = 'u8[32768]{0}', space=vmem, size = 0x8000, scoped, tag = 'input window, operand 1, single buffered']
    #allocation7 [shape = 's32[1]{0}', space=sflag, size = 0x4, scoped, tag = 'scoped memory for tpu_custom_call.1']
    #allocation8 [shape = 'u8[32768]{0}', space=vmem, size = 0x8000, scoped, tag = 'output window, operand 0']
    %7 = vsyncpa [#allocation4], 0
    %s8 = scalar_lea.sflag [#allocation4], 1
    %9 = vsyncpa %s8, 0
    %10 = vsyncpa [#allocation7], 0
    %11 = vsyncpa [#allocation5], 0
    %s12 = scalar_lea.sflag [#allocation5], 1
    %13 = vsyncpa %s12, 0
    loop: start=0, step=1, limit=4
    $region2: #{tpu_custom_call.1} parent=1 // loop_pre_header
      _
    $region3: #{tpu_custom_call.1} parent=1 // loop_header
      %s15 = sphi 0, %s19
      %p16 = scmp.ge.s32.totalorder %s15, 4
      %s22 = sphi 0, %s34
      %s23 = sphi 0, %s30
      %s24 = sphi 0, %s22
      %s25 = sphi 0, %s23
      %s26 = sphi 0, %s24
      %s27 = sphi 0, %s25
      %s39 = sphi 0, %s41
      %s42 = sphi 0, %s39
      %s43 = sphi 0, %s42
      %s59 = sphi 0, %s43
      %s65 = sphi 0, %s67
      %s68 = sphi 0, %s65
      %s69 = sphi 0, %s68
      %s85 = sphi 0, %s69
      %s91 = sphi 0, %s93
      %s94 = sphi 0, %s91
      %s95 = sphi 0, %s94
      %s111 = sphi 0, %s95
    $region4: #{tpu_custom_call.1} parent=1 // loop_header_branch
      %18 = sbr.rel (%p16) target = $region8
    $region5: #{tpu_custom_call.1} parent=1 // loop_body
      %s20 = ssub.s32 %s15, 1
      %s21 = ssub.s32 %s15, 2
      %s28 = sadd.s32 1, %s23
      %p29 = scmp.ge.s32.totalorder %s28, 1
      %s30 = scalar_select %p29, 0, %s28
      %s31 = sadd.s32 1, %s22
      %s32 = scalar_select %p29, %s31, %s22
      %p33 = scmp.ge.s32.totalorder %s32, 2
      %s34 = scalar_select %p33, 0, %s32
      %s35 = ssub.s32 %s22, %s34
      %s36 = ssub.s32 %s23, %s30
      %s37 = sor.u32 %s35, %s36
      %p38 = scmp.eq.s32.totalorder %s37, 0
      %s40 = sadd.s32 %s39, 1
      %s41 = scalar_select %p38, %s39, %s40
      %p44 = pneg %p38
      %p45 = scmp.eq.s32.totalorder %s15, 1
      %p46 = por %p44, %p45
      %p47 = scmp.ne.s32.totalorder %s39, %s42
      %p48 = scmp.eq.s32.totalorder %s15, 0
      %p49 = por %p47, %p48
      %p50 = scmp.ne.s32.totalorder %s39, %s42
      %p51 = scmp.eq.s32.totalorder %s20, 1
      %p52 = por %p50, %p51
      %p53 = scmp.ne.s32.totalorder %s42, %s43
      %p54 = scmp.eq.s32.totalorder %s20, 0
      %p55 = por %p53, %p54
      %p56 = scmp.ne.s32.totalorder %s42, %s43
      %p57 = scmp.eq.s32.totalorder %s21, 1
      %p58 = por %p56, %p57
      %p60 = scmp.ne.s32.totalorder %s43, %s59
      %p61 = scmp.eq.s32.totalorder %s21, 0
      %p62 = por %p60, %p61
      %s63 = ssub.s32 %s23, %s30
      %p64 = scmp.eq.s32.totalorder %s63, 0
      %s66 = sadd.s32 %s65, 1
      %s67 = scalar_select %p64, %s65, %s66
      %p70 = pneg %p64
      %p71 = scmp.eq.s32.totalorder %s15, 1
      %p72 = por %p70, %p71
      %p73 = scmp.ne.s32.totalorder %s65, %s68
      %p74 = scmp.eq.s32.totalorder %s15, 0
      %p75 = por %p73, %p74
      %p76 = scmp.ne.s32.totalorder %s65, %s68
      %p77 = scmp.eq.s32.totalorder %s20, 1
      %p78 = por %p76, %p77
      %p79 = scmp.ne.s32.totalorder %s68, %s69
      %p80 = scmp.eq.s32.totalorder %s20, 0
      %p81 = por %p79, %p80
      %p82 = scmp.ne.s32.totalorder %s68, %s69
      %p83 = scmp.eq.s32.totalorder %s21, 1
      %p84 = por %p82, %p83
      %p86 = scmp.ne.s32.totalorder %s69, %s85
      %p87 = scmp.eq.s32.totalorder %s21, 0
      %p88 = por %p86, %p87
      %s89 = ssub.s32 %s22, %s34
      %p90 = scmp.eq.s32.totalorder %s89, 0
      %s92 = sadd.s32 %s91, 1
      %s93 = scalar_select %p90, %s91, %s92
      %p96 = pneg %p90
      %p97 = scmp.eq.s32.totalorder %s15, 1
      %p98 = por %p96, %p97
      %p99 = scmp.ne.s32.totalorder %s91, %s94
      %p100 = scmp.eq.s32.totalorder %s15, 0
      %p101 = por %p99, %p100
      %p102 = scmp.ne.s32.totalorder %s91, %s94
      %p103 = scmp.eq.s32.totalorder %s20, 1
      %p104 = por %p102, %p103
      %p105 = scmp.ne.s32.totalorder %s94, %s95
      %p106 = scmp.eq.s32.totalorder %s20, 0
      %p107 = por %p105, %p106
      %p108 = scmp.ne.s32.totalorder %s94, %s95
      %p109 = scmp.eq.s32.totalorder %s21, 1
      %p110 = por %p108, %p109
      %p112 = scmp.ne.s32.totalorder %s95, %s111
      %p113 = scmp.eq.s32.totalorder %s21, 0
      %p114 = por %p112, %p113
      %p115 = scmp.le.s32.totalorder 1, %s15
      %p116 = scmp.lt.s32.totalorder %s15, 3
      %p117 = pnand %p115, %p116
      %p118 = pneg %p117
      // Predicated region
      $region9: #{tpu_custom_call.1} parent=5 // pred_check
        _
      $region10: #{tpu_custom_call.1} parent=5 // pred_check_branch
        %120 = sbr.rel (%p117) target = $region12
      $region11: #{tpu_custom_call.1} parent=5 // pred_region
        %s121 = ssub.s32 %s15, 1
        // Predicated region
        $region13: #{tpu_custom_call.1} parent=11 // pred_check
          %p122 = pneg %p81
        $region14: #{tpu_custom_call.1} parent=11 // pred_check_branch
          %124 = sbr.rel (%p122) target = $region16
        $region15: #{tpu_custom_call.1} parent=11 // pred_region
          %s125 = smul.u32 16, %s25
          %127 = vsyncadd [#allocation7], 0
          %s128 = smul.addr %s125, 4
          %s129 = scalar_lea.hbm %s1, %s128
          %s130 = sshll.u32 %s129, 4
          %s131 = int_to_ptr.hbm [resolvable:$true] %s130
          %s132 = sshll.u32 [#allocation6], 4
          %s133 = int_to_ptr.vmem [resolvable:$true] %s132
          %138 = dma.hbm_to_vmem [thread:$0]  %s131, 1024, %s133, [#allocation7], 64, 64, 4
        $region16: #{tpu_custom_call.1} parent=11 // pred_fallthru
          _
      $region12: #{tpu_custom_call.1} parent=5 // pred_fallthru
        _
      %p139 = scmp.lt.s32.totalorder %s15, 2
      // Predicated region
      $region17: #{tpu_custom_call.1} parent=5 // pred_check
        %p140 = pneg %p139
      $region18: #{tpu_custom_call.1} parent=5 // pred_check_branch
        %142 = sbr.rel (%p140) target = $region20
      $region19: #{tpu_custom_call.1} parent=5 // pred_region
        // Predicated region
        $region21: #{tpu_custom_call.1} parent=19 // pred_check
          %p143 = pneg %p49
        $region22: #{tpu_custom_call.1} parent=19 // pred_check_branch
          %145 = sbr.rel (%p143) target = $region24
        $region23: #{tpu_custom_call.1} parent=19 // pred_region
          %s146 = sand.u32 %s39, 1
          %s147 = scalar_lea.sflag [#allocation4], %s146
          %s148 = sand.u32 %s39, 1
          %s149 = smul.addr %s148, 32
          %s150 = scalar_lea.vmem [#allocation3], %s149
          %s151 = smul.u32 8, %s22
          %153 = vsyncadd %s147, 0
          %s154 = sadd.s32 %s23, %s151
          %s155 = smul.addr %s154, 4
          %s156 = scalar_lea.hbm %s0, %s155
          %s157 = sshll.u32 %s156, 4
          %s158 = int_to_ptr.hbm [resolvable:$true] %s157
          %s159 = sshll.u32 %s150, 4
          %s160 = int_to_ptr.vmem [resolvable:$true] %s159
          %165 = dma.hbm_to_vmem [thread:$0]  %s158, 512, %s160, %s147, 64, 64, 4
        $region24: #{tpu_custom_call.1} parent=19 // pred_fallthru
          _
      $region20: #{tpu_custom_call.1} parent=5 // pred_fallthru
        _
      %p166 = scmp.le.s32.totalorder 1, %s15
      %p167 = scmp.lt.s32.totalorder %s15, 3
      %p168 = pnand %p166, %p167
      %p169 = pneg %p168
      // Predicated region
      $region25: #{tpu_custom_call.1} parent=5 // pred_check
        _
      $region26: #{tpu_custom_call.1} parent=5 // pred_check_branch
        %171 = sbr.rel (%p168) target = $region28
      $region27: #{tpu_custom_call.1} parent=5 // pred_region
        %s172 = ssub.s32 %s15, 1
        %s173 = sand.u32 %s42, 1
        %s174 = scalar_lea.sflag [#allocation4], %s173
        %s175 = sand.u32 %s42, 1
        %s176 = smul.addr %s175, 32
        %s177 = scalar_lea.vmem [#allocation3], %s176
        // Predicated region
        $region29: #{tpu_custom_call.1} parent=27 // pred_check
          %p178 = pneg %p55
        $region30: #{tpu_custom_call.1} parent=27 // pred_check_branch
          %180 = sbr.rel (%p178) target = $region32
        $region31: #{tpu_custom_call.1} parent=27 // pred_region
          %182 = dma.done %s174, 512
        $region32: #{tpu_custom_call.1} parent=27 // pred_fallthru
          _
        // Predicated region
        $region33: #{tpu_custom_call.1} parent=27 // pred_check
          %p183 = pneg %p81
        $region34: #{tpu_custom_call.1} parent=27 // pred_check_branch
          %185 = sbr.rel (%p183) target = $region36
        $region35: #{tpu_custom_call.1} parent=27 // pred_region
          %187 = dma.done [#allocation7], 1024
        $region36: #{tpu_custom_call.1} parent=27 // pred_fallthru
          _
        %s188 = sand.u32 %s42, 1
        %s189 = scalar_lea.sflag [#allocation4], %s188
        %s190 = sand.u32 %s42, 1
        %s191 = smul.addr %s190, 32
        %s192 = scalar_lea.vmem [#allocation3], %s191
        %p193 = pneg %p55
        %p194 = pneg %p52
        %p195 = pneg %p81
        %p196 = pneg %p78
        %p197 = pneg %p107
        %p198 = pneg %p104
        %s199 = sand.u32 %s94, 1
        %s200 = scalar_lea.sflag [#allocation5], %s199
        %s201 = sand.u32 %s94, 1
        %s202 = smul.addr %s201, 32
        %s203 = scalar_lea.vmem [#allocation8], %s202
        %s204 = smul.u32 8, %s24
        %s205 = smul.u32 16, %s25
        %s206 = smul.u32 8, %s24
        %p207 = scmp.eq.s32.totalorder %s25, 0
        // Predicated region
        $region37: #{tpu_custom_call.1} parent=27 // pred_check
          %p208 = pneg %p207
        $region38: #{tpu_custom_call.1} parent=27 // pred_check_branch
          %210 = sbr.rel (%p208) target = $region40
        $region39: #{tpu_custom_call.1} parent=27 // pred_region
          %211 = vst [vmem:[#allocation2] sm:$0xff] 0.0
          %212 = vst [vmem:[#allocation2 + $0x8] sm:$0xff] 0.0
          %213 = vst [vmem:[#allocation2 + $0x10] sm:$0xff] 0.0
          %214 = vst [vmem:[#allocation2 + $0x18] sm:$0xff] 0.0
          %215 = vst [vmem:[#allocation2 + $0x20] sm:$0xff] 0.0
          %216 = vst [vmem:[#allocation2 + $0x28] sm:$0xff] 0.0
          %217 = vst [vmem:[#allocation2 + $0x30] sm:$0xff] 0.0
          %218 = vst [vmem:[#allocation2 + $0x38] sm:$0xff] 0.0
        $region40: #{tpu_custom_call.1} parent=27 // pred_fallthru
          _
        %v219 = vld [vmem:[#allocation2] sm:$0xff]
        %v220 = vld [vmem:[#allocation2 + $0x8] sm:$0xff]
        %v221 = vld [vmem:[#allocation2 + $0x10] sm:$0xff]
        %v222 = vld [vmem:[#allocation2 + $0x18] sm:$0xff]
        %v223 = vld [vmem:[#allocation2 + $0x20] sm:$0xff]
        %v224 = vld [vmem:[#allocation2 + $0x28] sm:$0xff]
        %v225 = vld [vmem:[#allocation2 + $0x30] sm:$0xff]
        %v226 = vld [vmem:[#allocation2 + $0x38] sm:$0xff]
        %v227 = vld [vmem:[%s177] sm:$0xf]
        %v228 = vld [vmem:[%s177 + $0x4] sm:$0xf]
        %v229 = vld [vmem:[%s177 + $0x8] sm:$0xf]
        %v230 = vld [vmem:[%s177 + $0xc] sm:$0xf]
        %v231 = vld [vmem:[%s177 + $0x10] sm:$0xf]
        %v232 = vld [vmem:[%s177 + $0x14] sm:$0xf]
        %v233 = vld [vmem:[%s177 + $0x18] sm:$0xf]
        %v234 = vld [vmem:[%s177 + $0x1c] sm:$0xf]
        %v235 = vld [vmem:[#allocation6] sm:$0xf]
        %v236 = vld [vmem:[#allocation6 + $0x4] sm:$0xf]
        %v237 = vld [vmem:[#allocation6 + $0x8] sm:$0xf]
        %v238 = vld [vmem:[#allocation6 + $0xc] sm:$0xf]
        %v239 = vld [vmem:[#allocation6 + $0x10] sm:$0xf]
        %v240 = vld [vmem:[#allocation6 + $0x14] sm:$0xf]
        %v241 = vld [vmem:[#allocation6 + $0x18] sm:$0xf]
        %v242 = vld [vmem:[#allocation6 + $0x1c] sm:$0xf]
        %v243 = vld [vmem:[#allocation6 + $0x20] sm:$0xf]
        %v244 = vld [vmem:[#allocation6 + $0x24] sm:$0xf]
        %v245 = vld [vmem:[#allocation6 + $0x28] sm:$0xf]
        %v246 = vld [vmem:[#allocation6 + $0x2c] sm:$0xf]
        %v247 = vld [vmem:[#allocation6 + $0x30] sm:$0xf]
        %v248 = vld [vmem:[#allocation6 + $0x34] sm:$0xf]
        %v249 = vld [vmem:[#allocation6 + $0x38] sm:$0xf]
        %v250 = vld [vmem:[#allocation6 + $0x3c] sm:$0xf]
        %v259 = vunpack.c.l.b16 %v227
        %v260 = vunpack.c.l.b16 %v228
        %v261 = vunpack.c.l.b16 %v229
        %v262 = vunpack.c.l.b16 %v230
        %v263 = vunpack.c.l.b16 %v231
        %v264 = vunpack.c.l.b16 %v232
        %v265 = vunpack.c.l.b16 %v233
        %v266 = vunpack.c.l.b16 %v234
        %v267 = vpack.c.b16 %v260, %v259
        %v268 = vpack.c.b16 %v262, %v261
        %v269 = vpack.c.b16 %v264, %v263
        %v270 = vpack.c.b16 %v266, %v265
        %v291 = vunpack.c.l.b16 %v235
        %v292 = vunpack.c.l.b16 %v236
        %v293 = vunpack.c.l.b16 %v237
        %v294 = vunpack.c.l.b16 %v238
        %v295 = vunpack.c.l.b16 %v239
        %v296 = vunpack.c.l.b16 %v240
        %v297 = vunpack.c.l.b16 %v241
        %v298 = vunpack.c.l.b16 %v242
        %v299 = vunpack.c.l.b16 %v243
        %v300 = vunpack.c.l.b16 %v244
        %v301 = vunpack.c.l.b16 %v245
        %v302 = vunpack.c.l.b16 %v246
        %v303 = vunpack.c.l.b16 %v247
        %v304 = vunpack.c.l.b16 %v248
        %v305 = vunpack.c.l.b16 %v249
        %v306 = vunpack.c.l.b16 %v250
        %v307 = vpack.c.b16 %v292, %v291
        %v308 = vpack.c.b16 %v294, %v293
        %v309 = vpack.c.b16 %v296, %v295
        %v310 = vpack.c.b16 %v298, %v297
        %v311 = vpack.c.b16 %v300, %v299
        %v312 = vpack.c.b16 %v302, %v301
        %v313 = vpack.c.b16 %v304, %v303
        %v314 = vpack.c.b16 %v306, %v305
        %323 = vmatpush.bf16.msra.mxu0 %v314
        %324 = vmatpush.bf16.msra.mxu0 %v313
        %325 = vmatpush.bf16.msra.mxu0 %v312
        %326 = vmatpush.bf16.msra.mxu0 %v311
        %327 = vmatpush.bf16.msra.mxu0 %v310
        %328 = vmatpush.bf16.msra.mxu0 %v309
        %329 = vmatpush.bf16.msra.mxu0 %v308
        %330 = vmatpush.bf16.msra.mxu0 %v307
        %331 = vmatmul.bf16.gmra.mxu0 %v267
        %v332 = vpop.f32.mrf.mxu0
        %v333 = vadd.f32 0.0, %v332
        %v334 = vpop.f32.mrf.mxu0
        %v335 = vadd.f32 0.0, %v334
        %336 = vmatmul.bf16.gmra.mxu0 %v268
        %v337 = vpop.f32.mrf.mxu0
        %v338 = vadd.f32 0.0, %v337
        %v339 = vpop.f32.mrf.mxu0
        %v340 = vadd.f32 0.0, %v339
        %341 = vmatmul.bf16.gmra.mxu0 %v269
        %v342 = vpop.f32.mrf.mxu0
        %v343 = vadd.f32 0.0, %v342
        %v344 = vpop.f32.mrf.mxu0
        %v345 = vadd.f32 0.0, %v344
        %346 = vmatmul.bf16.gmra.mxu0 %v270
        %v347 = vpop.f32.mrf.mxu0
        %v348 = vadd.f32 0.0, %v347
        %v349 = vpop.f32.mrf.mxu0
        %v350 = vadd.f32 0.0, %v349
        %351 = vdwg.mxu0
        %v352 = vadd.f32 %v219, %v333
        %v353 = vadd.f32 %v220, %v335
        %v354 = vadd.f32 %v221, %v338
        %v355 = vadd.f32 %v222, %v340
        %v356 = vadd.f32 %v223, %v343
        %v357 = vadd.f32 %v224, %v345
        %v358 = vadd.f32 %v225, %v348
        %v359 = vadd.f32 %v226, %v350
        %360 = vst [vmem:[#allocation2] sm:$0xff] %v352
        %361 = vst [vmem:[#allocation2 + $0x8] sm:$0xff] %v353
        %362 = vst [vmem:[#allocation2 + $0x10] sm:$0xff] %v354
        %363 = vst [vmem:[#allocation2 + $0x18] sm:$0xff] %v355
        %364 = vst [vmem:[#allocation2 + $0x20] sm:$0xff] %v356
        %365 = vst [vmem:[#allocation2 + $0x28] sm:$0xff] %v357
        %366 = vst [vmem:[#allocation2 + $0x30] sm:$0xff] %v358
        %367 = vst [vmem:[#allocation2 + $0x38] sm:$0xff] %v359
        // Predicated region
        $region41: #{tpu_custom_call.1} parent=27 // pred_check
          %p368 = pneg %p207
        $region42: #{tpu_custom_call.1} parent=27 // pred_check_branch
          %370 = sbr.rel (%p368) target = $region44
        $region43: #{tpu_custom_call.1} parent=27 // pred_region
          %v371 = vld [vmem:[#allocation2] sm:$0xff]
          %v372 = vld [vmem:[#allocation2 + $0x8] sm:$0xff]
          %v373 = vld [vmem:[#allocation2 + $0x10] sm:$0xff]
          %v374 = vld [vmem:[#allocation2 + $0x18] sm:$0xff]
          %v375 = vld [vmem:[#allocation2 + $0x20] sm:$0xff]
          %v376 = vld [vmem:[#allocation2 + $0x28] sm:$0xff]
          %v377 = vld [vmem:[#allocation2 + $0x30] sm:$0xff]
          %v378 = vld [vmem:[#allocation2 + $0x38] sm:$0xff]
          %v379 = vpack.c.bf16 %v371, %v371
          %v380 = vpack.c.bf16 %v372, %v372
          %v381 = vpack.c.bf16 %v373, %v373
          %v382 = vpack.c.bf16 %v374, %v374
          %v383 = vpack.c.bf16 %v375, %v375
          %v384 = vpack.c.bf16 %v376, %v376
          %v385 = vpack.c.bf16 %v377, %v377
          %v386 = vpack.c.bf16 %v378, %v378
          %387 = vst [vmem:[%s203] sm:$0xf] %v379
          %388 = vst [vmem:[%s203 + $0x4] sm:$0xf] %v380
          %389 = vst [vmem:[%s203 + $0x8] sm:$0xf] %v381
          %390 = vst [vmem:[%s203 + $0xc] sm:$0xf] %v382
          %391 = vst [vmem:[%s203 + $0x10] sm:$0xf] %v383
          %392 = vst [vmem:[%s203 + $0x14] sm:$0xf] %v384
          %393 = vst [vmem:[%s203 + $0x18] sm:$0xf] %v385
          %394 = vst [vmem:[%s203 + $0x1c] sm:$0xf] %v386
        $region44: #{tpu_custom_call.1} parent=27 // pred_fallthru
          _
        %s395 = sand.u32 %s94, 1
        %s396 = scalar_lea.sflag [#allocation5], %s395
        %s397 = sand.u32 %s94, 1
        %s398 = smul.addr %s397, 32
        %s399 = scalar_lea.vmem [#allocation8], %s398
        // Predicated region
        $region45: #{tpu_custom_call.1} parent=27 // pred_check
          %p400 = pneg %p104
        $region46: #{tpu_custom_call.1} parent=27 // pred_check_branch
          %402 = sbr.rel (%p400) target = $region48
        $region47: #{tpu_custom_call.1} parent=27 // pred_region
          %s403 = smul.u32 8, %s24
          %405 = vsyncadd %s396, 0
          %s406 = smul.addr %s403, 4
          %s407 = scalar_lea.hbm %s2, %s406
          %s408 = sshll.u32 %s399, 4
          %s409 = int_to_ptr.vmem [resolvable:$true] %s408
          %s410 = sshll.u32 %s407, 4
          %s411 = int_to_ptr.hbm [resolvable:$true] %s410
          %416 = dma.vmem_to_hbm [thread:$0]  %s409, 512, %s411, %s396, 64, 64, 4
        $region48: #{tpu_custom_call.1} parent=27 // pred_fallthru
          _
      $region28: #{tpu_custom_call.1} parent=5 // pred_fallthru
        _
      %p417 = scmp.le.s32.totalorder 2, %s15
      // Predicated region
      $region49: #{tpu_custom_call.1} parent=5 // pred_check
        %p418 = pneg %p417
      $region50: #{tpu_custom_call.1} parent=5 // pred_check_branch
        %420 = sbr.rel (%p418) target = $region52
      $region51: #{tpu_custom_call.1} parent=5 // pred_region
        %s421 = ssub.s32 %s15, 2
        // Predicated region
        $region53: #{tpu_custom_call.1} parent=51 // pred_check
          %p422 = pneg %p110
        $region54: #{tpu_custom_call.1} parent=51 // pred_check_branch
          %424 = sbr.rel (%p422) target = $region56
        $region55: #{tpu_custom_call.1} parent=51 // pred_region
          %s425 = sand.u32 %s95, 1
          %s426 = scalar_lea.sflag [#allocation5], %s425
          %s427 = sand.u32 %s95, 1
          %s428 = smul.addr %s427, 32
          %s429 = scalar_lea.vmem [#allocation8], %s428
          %431 = dma.done %s426, 512
        $region56: #{tpu_custom_call.1} parent=51 // pred_fallthru
          _
      $region52: #{tpu_custom_call.1} parent=5 // pred_fallthru
        _
    $region6: #{tpu_custom_call.1} parent=1 // loop_footer
      %s19 = sadd.s32 1, %s15
    $region7: #{tpu_custom_call.1} parent=1 // loop_footer_branch
      %14 = sbr.rel target = $region3
    $region8: #{tpu_custom_call.1} parent=1 // loop_exit
      _
    %432 = vsyncpa [#allocation4], 1
    %s433 = scalar_lea.sflag [#allocation4], 1
    %434 = vsyncpa %s433, 1
    %435 = vsyncpa [#allocation7], 1
    %436 = vsyncpa [#allocation5], 1
    %s437 = scalar_lea.sflag [#allocation5], 1
    %438 = vsyncpa %s437, 1

</llo_original>
